<compile_context>
chip_gen: v6e
topology: v6e:2x2x1
jax: 0.10.0
libtpu: 0.0.40
codegen_flags: <defaults>
</compile_context>

<pallas_src>
import functools
import math

import jax
import jax.numpy as jnp
from jax.experimental import pallas as pl
from jax.experimental.pallas import tpu as pltpu


def _round_up(x, m):
    return ((x + m - 1) // m) * m


# ----------------------------------------------------------------------------
# Parameter construction (deterministic, mirrors GaussianSmearingVN.__init__)
# ----------------------------------------------------------------------------
def make_gaussian_smearing_vn_params(start=0.0, stop=10.0, num_gaussians=64):
    assert num_gaussians % 8 == 0
    num_per_direction = num_gaussians // 8
    delta = (stop - start) / num_per_direction
    # torch.linspace(start + delta/2, stop - delta/2, num_per_direction)
    offset = jnp.linspace(start + delta / 2.0, stop - delta / 2.0,
                          num_per_direction, dtype=jnp.float32)

    # get_unit_vector(): meshgrid of (-1, 1)^3 in 'ij' order, normalized by sqrt(3)
    vec = jnp.array([-1.0, 1.0], dtype=jnp.float32)
    grids = jnp.meshgrid(vec, vec, vec, indexing="ij")
    unit_vector = jnp.stack([g.reshape(-1) for g in grids], axis=-1) / math.sqrt(3.0)
    # (8, 3)

    # kernel_vectors: (8, 1, 3) * (1, num_per_direction, 1) -> (num_gaussians, 3)
    kernel_vectors = (unit_vector[:, None, :] * offset[None, :, None]).reshape(-1, 3)
    coeff = -0.5 / (delta ** 2)
    return kernel_vectors.astype(jnp.float32), float(coeff)


# ----------------------------------------------------------------------------
# Pallas kernel
# ----------------------------------------------------------------------------
def _gaussian_smearing_kernel(dist_ref, par_ref, out_ref, *, coeff):
    # dist_ref: (tm, 3) f32
    # par_ref:  (4, gl) f32 — rows 0..2: one-hot xyz masks m_c (m_c[g*3 + c'] = [c == c']),
    #                         row 3: flattened kernel vectors kv_flat[g*3 + c] = kv[g, c]
    # out_ref:  (tm, gl)    — out[n, g*3 + c] = exp(coeff * (d[n, c] - kv[g, c])^2)
    d = dist_ref[...]                       # (tm, 3)
    m0 = par_ref[0:1, :]                    # (1, gl)
    m1 = par_ref[1:2, :]
    m2 = par_ref[2:3, :]
    kv = par_ref[3:4, :]

    # Per-lane xyz component via one-hot masks (pure VPU, no iota/mod/compare per tile).
    d_t = d[:, 0:1] * m0 + d[:, 1:2] * m1 + d[:, 2:3] * m2   # (tm, gl)
    diff = d_t - kv                                          # broadcast (1, gl)
    out_ref[...] = jnp.exp(coeff * (diff * diff)).astype(out_ref.dtype)


def gaussian_smearing_vn(dist, kernel_vectors, coeff, *, tm=4096,
                         out_dtype=jnp.float32):
    """Pallas implementation of GaussianSmearingVN.forward.

    dist: any shape flattenable to (N, 3) (matches dist.view(-1, 1, 3)).
    Returns: (N, num_gaussians, 3) array of dtype `out_dtype`.

    out_dtype=jnp.float32 (default) matches the PyTorch module exactly.
    out_dtype=jnp.bfloat16 halves the HBM writeback (the kernel is writeback bound)
    at ~3 significant digits of output precision; exp itself is always f32.
    """
    dist2d = jnp.reshape(dist, (-1, 3)).astype(jnp.float32)
    n = dist2d.shape[0]
    g = kernel_vectors.shape[0]
    gl = g * 3

    if n == 0:
        return jnp.zeros((0, g, 3), dtype=out_dtype)

    # Tiny parameter block: 3 one-hot component masks + flattened kernel vectors.
    kv_flat = jnp.reshape(kernel_vectors.astype(jnp.float32), (1, gl))
    comp = jnp.arange(gl, dtype=jnp.int32) % 3
    masks = (comp[None, :] == jnp.arange(3, dtype=jnp.int32)[:, None]
             ).astype(jnp.float32)                                    # (3, gl)
    params = jnp.concatenate([masks, kv_flat], axis=0)                # (4, gl)

    # Row tile: multiple of 8 sublanes, clamped to the sublane-padded problem size.
    tm = max(8, _round_up(int(tm), 8))
    n_pad8 = _round_up(n, 8)
    tm_eff = min(tm, n_pad8)
    if n_pad8 != n:
        dist2d = jnp.pad(dist2d, ((0, n_pad8 - n), (0, 0)))

    grid = (pl.cdiv(n_pad8, tm_eff),)   # ragged last block handled by Pallas
    kernel = functools.partial(_gaussian_smearing_kernel, coeff=float(coeff))

    out_flat = pl.pallas_call(
        kernel,
        out_shape=jax.ShapeDtypeStruct((n_pad8, gl), out_dtype),
        grid_spec=pl.GridSpec(
            grid=grid,
            in_specs=[
                pl.BlockSpec((tm_eff, 3), lambda i: (i, 0)),
                pl.BlockSpec((4, gl), lambda i: (0, 0)),
            ],
            out_specs=pl.BlockSpec((tm_eff, gl), lambda i: (i, 0)),
        ),
        compiler_params=pltpu.CompilerParams(
            dimension_semantics=("parallel",),
        ),
    )(dist2d, params)

    # (N, G*3) with g-major / xyz-minor flattening -> free row-major reshape.
    return out_flat[:n].reshape(n, g, 3)


# ----------------------------------------------------------------------------
# Reference (plain JAX) for verification
# ----------------------------------------------------------------------------
def gaussian_smearing_vn_ref(dist, kernel_vectors, coeff):
    dist2d = jnp.reshape(dist, (-1, 3)).astype(jnp.float32)
    diff = dist2d[:, None, :] - kernel_vectors[None, :, :]
    return jnp.exp(coeff * diff ** 2)


if __name__ == "__main__":
    key = jax.random.PRNGKey(0)
    kernel_vectors, coeff = make_gaussian_smearing_vn_params(
        start=0.0, stop=10.0, num_gaussians=64)

    # --- Small input (matches dist.view(-1, 1, 3) usage), f32 output --------
    dist = jax.random.normal(key, (16, 3), dtype=jnp.float32) * 3.0
    out = jax.block_until_ready(gaussian_smearing_vn(dist, kernel_vectors, coeff))
    ref = gaussian_smearing_vn_ref(dist, kernel_vectors, coeff)
    assert out.shape == (16, 64, 3), out.shape
    assert jnp.allclose(out, ref, atol=1e-5, rtol=1e-5), "f32 mismatch vs reference"

    # --- Ragged N (not a multiple of the tile), multi-block grid ------------
    dist2 = jax.random.normal(jax.random.PRNGKey(1), (300, 3), jnp.float32) * 3.0
    out2 = jax.block_until_ready(
        gaussian_smearing_vn(dist2, kernel_vectors, coeff, tm=256))
    ref2 = gaussian_smearing_vn_ref(dist2, kernel_vectors, coeff)
    assert out2.shape == (300, 64, 3), out2.shape
    assert jnp.allclose(out2, ref2, atol=1e-5, rtol=1e-5), "ragged mismatch"

    # --- bf16 output path (half the HBM writeback; exp still computed in f32)
    out_bf16 = jax.block_until_ready(
        gaussian_smearing_vn(dist, kernel_vectors, coeff, out_dtype=jnp.bfloat16))
    assert out_bf16.dtype == jnp.bfloat16
    assert jnp.allclose(out_bf16.astype(jnp.float32), ref, atol=2e-2, rtol=2e-2), \
        "bf16 mismatch vs reference"

    print("KERNEL_OK")
</pallas_src>

<mosaic_0001>
module attributes {stable_mosaic.version = 11 : i64} {
  func.func @_gaussian_smearing_kernel(%arg0: i32, %arg1: memref<16x3xf32, #tpu.memory_space<vmem>>, %arg2: memref<4x192xf32, #tpu.memory_space<vmem>>, %arg3: memref<16x192xf32, #tpu.memory_space<vmem>>) attributes {dimension_semantics = [#tpu.dimension_semantics<parallel>], iteration_bounds = array<i64: 1>, scalar_prefetch = 0 : i64, scratch_operands = 0 : i64, tpu.core_type = #tpu.core_type<tc>, window_params = [{transform_indices = @transform_0, window_bounds = array<i64: 16, 3>}, {pipeline_mode = #tpu.pipeline_mode<synchronous>, transform_indices = @transform_1, window_bounds = array<i64: 4, 192>}, {transform_indices = @transform_2, window_bounds = array<i64: 16, 192>}]} {
    %c0 = arith.constant 0 : index
    %c0_0 = arith.constant 0 : index
    %0 = vector.load %arg1[%c0, %c0_0] : memref<16x3xf32, #tpu.memory_space<vmem>>, vector<16x3xf32>
    %c0_1 = arith.constant 0 : index
    %c0_2 = arith.constant 0 : index
    %1 = vector.load %arg2[%c0_1, %c0_2] : memref<4x192xf32, #tpu.memory_space<vmem>>, vector<1x192xf32>
    %c1 = arith.constant 1 : index
    %c0_3 = arith.constant 0 : index
    %2 = vector.load %arg2[%c1, %c0_3] : memref<4x192xf32, #tpu.memory_space<vmem>>, vector<1x192xf32>
    %c2 = arith.constant 2 : index
    %c0_4 = arith.constant 0 : index
    %3 = vector.load %arg2[%c2, %c0_4] : memref<4x192xf32, #tpu.memory_space<vmem>>, vector<1x192xf32>
    %c3 = arith.constant 3 : index
    %c0_5 = arith.constant 0 : index
    %4 = vector.load %arg2[%c3, %c0_5] : memref<4x192xf32, #tpu.memory_space<vmem>>, vector<1x192xf32>
    %5 = vector.extract_strided_slice %0 {offsets = [0, 0], sizes = [16, 1], strides = [1, 1]} : vector<16x3xf32> to vector<16x1xf32>
    %6 = vector.broadcast %5 : vector<16x1xf32> to vector<16x192xf32>
    %7 = vector.broadcast %1 : vector<1x192xf32> to vector<16x192xf32>
    %8 = arith.mulf %6, %7 : vector<16x192xf32>
    %9 = vector.extract_strided_slice %0 {offsets = [0, 1], sizes = [16, 1], strides = [1, 1]} : vector<16x3xf32> to vector<16x1xf32>
    %10 = vector.broadcast %9 : vector<16x1xf32> to vector<16x192xf32>
    %11 = vector.broadcast %2 : vector<1x192xf32> to vector<16x192xf32>
    %12 = arith.mulf %10, %11 : vector<16x192xf32>
    %13 = arith.addf %8, %12 : vector<16x192xf32>
    %14 = vector.extract_strided_slice %0 {offsets = [0, 2], sizes = [16, 1], strides = [1, 1]} : vector<16x3xf32> to vector<16x1xf32>
    %15 = vector.broadcast %14 : vector<16x1xf32> to vector<16x192xf32>
    %16 = vector.broadcast %3 : vector<1x192xf32> to vector<16x192xf32>
    %17 = arith.mulf %15, %16 : vector<16x192xf32>
    %18 = arith.addf %13, %17 : vector<16x192xf32>
    %19 = vector.broadcast %4 : vector<1x192xf32> to vector<16x192xf32>
    %20 = arith.subf %18, %19 : vector<16x192xf32>
    %21 = arith.mulf %20, %20 : vector<16x192xf32>
    %cst = arith.constant -3.200000e-01 : f32
    %22 = vector.broadcast %cst : f32 to vector<16x192xf32>
    %23 = arith.mulf %22, %21 : vector<16x192xf32>
    %24 = math.exp %23 : vector<16x192xf32>
    %c0_6 = arith.constant 0 : index
    %c0_7 = arith.constant 0 : index
    %25 = vector.load %arg3[%c0_6, %c0_7] : memref<16x192xf32, #tpu.memory_space<vmem>>, vector<16x192xf32>
    tpu.vector_store %arg3[%c0_6, %c0_7], %24 {strides = array<i32>} : memref<16x192xf32, #tpu.memory_space<vmem>>, vector<16x192xf32>,
    return
  }
  func.func @transform_0(%arg0: i32) -> (i32, i32) {
    %c0_i32 = arith.constant 0 : i32
    %c0_i32_0 = arith.constant 0 : i32
    return %arg0, %c0_i32 : i32, i32
  }
  func.func @transform_1(%arg0: i32) -> (i32, i32) {
    %c0_i32 = arith.constant 0 : i32
    %c0_i32_0 = arith.constant 0 : i32
    %c0_i32_1 = arith.constant 0 : i32
    return %c0_i32, %c0_i32_0 : i32, i32
  }
  func.func @transform_2(%arg0: i32) -> (i32, i32) {
    %c0_i32 = arith.constant 0 : i32
    %c0_i32_0 = arith.constant 0 : i32
    return %arg0, %c0_i32 : i32, i32
  }
}

</mosaic_0001>

<llo_original>
// kernel: tpu_custom_call.1
$region0: #{tpu_custom_call.1}
  #allocation0 [shape = 'u32[]', space=smem, size = 0x4, offset = 0x4, fixed_abs, tag = 'smem constant byte address 0x4 - core index']
  #allocation1 [shape = 'u32[144,128]{1,0:T(1,128)}', space=vmem, size = 0x12000, scoped, tag = 'internal scratch']
  %s0 = inlined_call_operand.vmem [shape: f32[16,3], index: 0, kind: input, shape index: {}]
  %s1 = inlined_call_operand.vmem [shape: f32[4,192], index: 1, kind: input, shape index: {}]
  %s2 = inlined_call_operand.hbm [shape: f32[16,192], index: 2, kind: output, shape index: {}]
  %s3 = sld [smem:[#allocation0]]
  $region18: #{tpu_custom_call.1} parent=0
    _
  %s5 = ssub.s32 1, %s3
  %s6 = scalar_select 0, %s5, %s3
  $region1: #{tpu_custom_call.1} parent=0
    #allocation2 [shape = 'u8[16384]{0}', space=vmem, size = 0x4000, scoped, tag = 'output window, operand 0, single buffered']
    #allocation3 [shape = 's32[1]{0}', space=sflag, size = 0x4, scoped, tag = 'scoped memory for tpu_custom_call.1']
    %7 = vsyncpa [#allocation3], 0
    // Predicated region
    $region2: #{tpu_custom_call.1} parent=1 // pred_check
      _
    $region3: #{tpu_custom_call.1} parent=1 // pred_check_branch
      %9 = sbr.rel (0) target = $region5
    $region4: #{tpu_custom_call.1} parent=1 // pred_region
      _
    $region5: #{tpu_custom_call.1} parent=1 // pred_fallthru
      _
    // Predicated region
    $region6: #{tpu_custom_call.1} parent=1 // pred_check
      _
    $region7: #{tpu_custom_call.1} parent=1 // pred_check_branch
      %11 = sbr.rel (0) target = $region9
    $region8: #{tpu_custom_call.1} parent=1 // pred_region
      _
    $region9: #{tpu_custom_call.1} parent=1 // pred_fallthru
      _
    %v12 = vld [vmem:[%s0] sm:$0xff]
    %v13 = vld [vmem:[%s0 + $0x8] sm:$0xff]
    %v14 = vld [vmem:[%s1] ss:$4 sm:$0x3]
    %s15 = scalar_lea.vmem %s1, 1
    %v16 = vld [vmem:[%s15] ss:$4 sm:$0x3]
    %s17 = scalar_lea.vmem %s1, 2
    %v18 = vld [vmem:[%s17] ss:$4 sm:$0x3]
    %s19 = scalar_lea.vmem %s1, 3
    %v20 = vld [vmem:[%s19] ss:$4 sm:$0x3]
    %22 = vset.pattern.permute.xlu0 0
    %23 = vperm.xlu0 %22, %v12
    %v24 = vpop.permute.xlu0 %23
    %27 = vset.pattern.permute.xlu0 0
    %28 = vperm.xlu0 %27, %v13
    %v29 = vpop.permute.xlu0 %28
    %v32 = vlaneseq
    %v33 = vshrl.u32 %v32, 7
    %v34 = vsub.s32 0, %v33
    %v35 = vrot.slane %v14, %v34
    %v36 = vlaneseq
    %v37 = vshrl.u32 %v36, 7
    %v38 = vsub.s32 1, %v37
    %v39 = vrot.slane %v14, %v38
    %v42 = vmul.f32 %v24, %v35
    %v43 = vmul.f32 %v24, %v39
    %v44 = vmul.f32 %v29, %v35
    %v45 = vmul.f32 %v29, %v39
    %46 = vset.pattern.permute.xlu0 1
    %47 = vperm.xlu0 %46, %v12
    %v48 = vpop.permute.xlu0 %47
    %50 = vset.pattern.permute.xlu0 1
    %51 = vperm.xlu0 %50, %v13
    %v52 = vpop.permute.xlu0 %51
    %v55 = vlaneseq
    %v56 = vshrl.u32 %v55, 7
    %v57 = vsub.s32 0, %v56
    %v58 = vrot.slane %v16, %v57
    %v59 = vlaneseq
    %v60 = vshrl.u32 %v59, 7
    %v61 = vsub.s32 1, %v60
    %v62 = vrot.slane %v16, %v61
    %v65 = vmul.f32 %v48, %v58
    %v66 = vmul.f32 %v48, %v62
    %v67 = vmul.f32 %v52, %v58
    %v68 = vmul.f32 %v52, %v62
    %v69 = vadd.f32 %v42, %v65
    %v70 = vadd.f32 %v43, %v66
    %v71 = vadd.f32 %v44, %v67
    %v72 = vadd.f32 %v45, %v68
    %73 = vset.pattern.permute.xlu0 2
    %74 = vperm.xlu0 %73, %v12
    %v75 = vpop.permute.xlu0 %74
    %77 = vset.pattern.permute.xlu0 2
    %78 = vperm.xlu0 %77, %v13
    %v79 = vpop.permute.xlu0 %78
    %v82 = vlaneseq
    %v83 = vshrl.u32 %v82, 7
    %v84 = vsub.s32 0, %v83
    %v85 = vrot.slane %v18, %v84
    %v86 = vlaneseq
    %v87 = vshrl.u32 %v86, 7
    %v88 = vsub.s32 1, %v87
    %v89 = vrot.slane %v18, %v88
    %v92 = vmul.f32 %v75, %v85
    %v93 = vmul.f32 %v75, %v89
    %v94 = vmul.f32 %v79, %v85
    %v95 = vmul.f32 %v79, %v89
    %v96 = vadd.f32 %v69, %v92
    %v97 = vadd.f32 %v70, %v93
    %v98 = vadd.f32 %v71, %v94
    %v99 = vadd.f32 %v72, %v95
    %v101 = vlaneseq
    %v102 = vshrl.u32 %v101, 7
    %v103 = vsub.s32 0, %v102
    %v104 = vrot.slane %v20, %v103
    %v105 = vlaneseq
    %v106 = vshrl.u32 %v105, 7
    %v107 = vsub.s32 1, %v106
    %v108 = vrot.slane %v20, %v107
    %v111 = vsub.f32 %v96, %v104
    %v112 = vsub.f32 %v97, %v108
    %v113 = vsub.f32 %v98, %v104
    %v114 = vsub.f32 %v99, %v108
    %v115 = vmul.f32 %v111, %v111
    %v116 = vmul.f32 %v112, %v112
    %v117 = vmul.f32 %v113, %v113
    %v118 = vmul.f32 %v114, %v114
    %v119 = vmul.f32 %v115, -0.32
    %v120 = vmul.f32 %v116, -0.32
    %v121 = vmul.f32 %v117, -0.32
    %v122 = vmul.f32 %v118, -0.32
    %v123 = vmul.f32 %v119, 1.442695
    %v124 = vpow.pop %v123
    %v125 = vmul.f32 %v120, 1.442695
    %v126 = vpow.pop %v125
    %v127 = vmul.f32 %v121, 1.442695
    %v128 = vpow.pop %v127
    %v129 = vmul.f32 %v122, 1.442695
    %v130 = vpow.pop %v129
    %131 = vst [vmem:[#allocation2] sm:$0xff] %v124
    %vm132 = vcmask 523264
    %133 = vst.msk [vmem:[#allocation2 + $0x8] sm:$0xff] %vm132, %v126
    %134 = vst [vmem:[#allocation2 + $0x10] sm:$0xff] %v128
    %135 = vst.msk [vmem:[#allocation2 + $0x18] sm:$0xff] %vm132, %v130
    // Predicated region
    $region10: #{tpu_custom_call.1} parent=1 // pred_check
      _
    $region11: #{tpu_custom_call.1} parent=1 // pred_check_branch
      %137 = sbr.rel (0) target = $region13
    $region12: #{tpu_custom_call.1} parent=1 // pred_region
      %s139 = ssub.s32 512, 512
      %140 = vsyncadd [#allocation3], %s139
      %s141 = sshll.u32 [#allocation2], 4
      %s142 = int_to_ptr.vmem [resolvable:$true] %s141
      %147 = dma.vmem_to_hbm [thread:$0]  %s142, 512, %s2, [#allocation3], 256, 256, 16
    $region13: #{tpu_custom_call.1} parent=1 // pred_fallthru
      _
    // Predicated region
    $region14: #{tpu_custom_call.1} parent=1 // pred_check
      _
    $region15: #{tpu_custom_call.1} parent=1 // pred_check_branch
      %149 = sbr.rel (0) target = $region17
    $region16: #{tpu_custom_call.1} parent=1 // pred_region
      %150 = dma.done [#allocation3], 512
    $region17: #{tpu_custom_call.1} parent=1 // pred_fallthru
      _
    %151 = vsyncpa [#allocation3], 1

</llo_original>
